<compile_context>
chip_gen: v5e
topology: v5e:2x2
jax: 0.10.0
libtpu: 0.0.40
codegen_flags: <defaults>
</compile_context>

<pallas_src>
import jax
import jax.numpy as jnp
from jax.experimental import pallas as pl
from jax.experimental.pallas import tpu as pltpu


def _loglinear_kernel(x_ref, w_ref, b_ref, o_ref):
    # x_ref: (TM, D) VMEM   w_ref: (1, D) VMEM (lane-dense)
    # b_ref: (1,)   SMEM f32   o_ref: (1, TM) VMEM (lane-dense logits)
    logits = jax.lax.dot_general(
        w_ref[...], x_ref[...],
        dimension_numbers=(((1,), (1,)), ((), ())),   # contract on D -> (1, TM)
        preferred_element_type=jnp.float32,           # f32 accumulation in MXU path
        precision=jax.lax.Precision.HIGHEST,          # full f32 passes for f32 inputs
    )
    o_ref[...] = (logits + b_ref[0]).astype(o_ref.dtype)


_PER_BUFFER_BYTES = 16 * 1024 * 1024    # x bytes per pipeline buffer (x2 for double-buffer)
_VMEM_LIMIT_BYTES = 48 * 1024 * 1024    # headroom under v7x's 64 MiB physical VMEM


def _pick_tile_rows(batch, dim, dtype_bytes):
    """Rows per x tile: whole batch if it fits, else a multiple of 128."""
    max_rows = _PER_BUFFER_BYTES // max(dim * dtype_bytes, 1)
    if batch <= max_rows:
        return batch                         # single tile; block == full array dims
    # Multiple of 128 keeps the (TM, D) x block sublane-aligned and the
    # lane-dense (1, TM) output block 128-lane-aligned (ragged last tile OK).
    # TODO(synk): for pathologically large D (> ~48K f32 features) the 128-row
    # floor overshoots the per-buffer budget; fine under the 48 MiB limit here.
    return max(128, (max_rows // 128) * 128)


def loglinear_forward(x, weight, bias, *, tile_rows=None):
    """Forward of LogLinear: (B, D) -> (B, 1). weight: (1, D), bias: (1,)."""
    B, D = x.shape
    w_row = weight.reshape(1, D).astype(x.dtype)    # lane-dense, native-dtype weight
    b_smem = bias.reshape(1).astype(jnp.float32)    # scalar bias, lives in SMEM

    itemsize = jnp.dtype(x.dtype).itemsize
    tm = tile_rows if tile_rows is not None else _pick_tile_rows(B, D, itemsize)
    tm = min(tm, B)
    if tm < B:                                      # sanitize user-provided tile_rows
        tm = min(max(128, (tm // 128) * 128), B)
    grid = (pl.cdiv(B, tm),)

    cost = pl.CostEstimate(
        flops=2 * B * D,
        transcendentals=0,
        bytes_accessed=B * D * itemsize + D * itemsize + B * itemsize + 4,
    )

    out_row = pl.pallas_call(
        _loglinear_kernel,
        out_shape=jax.ShapeDtypeStruct((1, B), x.dtype),
        grid_spec=pltpu.PrefetchScalarGridSpec(
            num_scalar_prefetch=0,
            grid=grid,
            in_specs=[
                pl.BlockSpec((tm, D), lambda i: (i, 0)),             # x row tile
                pl.BlockSpec((1, D), lambda i: (0, 0)),              # weight (constant)
                pl.BlockSpec(memory_space=pltpu.MemorySpace.SMEM),   # bias scalar
            ],
            out_specs=pl.BlockSpec((1, tm), lambda i: (0, i)),       # lane-dense logits
        ),
        compiler_params=pltpu.CompilerParams(
            dimension_semantics=("parallel",),     # row tiles independent (megacore)
            vmem_limit_bytes=_VMEM_LIMIT_BYTES,
        ),
        cost_estimate=cost,
    )(x, w_row, b_smem)

    return out_row.reshape(B, 1)                    # row vector -> column, free reshape


def predict(x, weight, bias, x_is_logits=False):
    """Mirror of LogLinear.predict: sigmoid(z) > 0.5  <=>  z > 0."""
    logits = x if x_is_logits else loglinear_forward(x, weight, bias)
    return (logits > 0).astype(logits.dtype)


if __name__ == "__main__":
    key = jax.random.PRNGKey(0)
    kx, kw, kb, kx2 = jax.random.split(key, 4)

    batch = 8
    embedding_dim = 32

    # Deterministic init mimicking nn.Linear's uniform(-1/sqrt(D), 1/sqrt(D)).
    bound = 1.0 / (embedding_dim ** 0.5)
    weight = jax.random.uniform(
        kw, (1, embedding_dim), minval=-bound, maxval=bound, dtype=jnp.float32
    )
    bias = jax.random.uniform(
        kb, (1,), minval=-bound, maxval=bound, dtype=jnp.float32
    )

    def ref_forward(xv):
        # f32 elementwise multiply + reduce reference (no MXU rounding).
        return jnp.sum(xv.astype(jnp.float32) * weight, axis=-1, keepdims=True) + bias

    # --- small single-tile f32 case -----------------------------------------
    x = jax.random.normal(kx, (batch, embedding_dim), dtype=jnp.float32)
    logits = jax.block_until_ready(loglinear_forward(x, weight, bias))
    ref = ref_forward(x)
    assert logits.shape == (batch, 1)
    assert jnp.allclose(logits, ref, atol=1e-4, rtol=1e-4)

    # --- multi-tile + ragged last tile (grid=3, last tile 44 rows) ----------
    batch2 = 300
    x2 = jax.random.normal(kx2, (batch2, embedding_dim), dtype=jnp.float32)
    logits2 = jax.block_until_ready(
        loglinear_forward(x2, weight, bias, tile_rows=128)
    )
    ref2 = ref_forward(x2)
    assert logits2.shape == (batch2, 1)
    assert jnp.allclose(logits2, ref2, atol=1e-4, rtol=1e-4)

    # --- bf16 input path (native MXU contraction, weight cast to bf16) ------
    x3 = x.astype(jnp.bfloat16)
    logits3 = jax.block_until_ready(loglinear_forward(x3, weight, bias))
    assert logits3.shape == (batch, 1)
    assert jnp.allclose(logits3.astype(jnp.float32), ref, atol=1e-1, rtol=1e-1)

    # --- predict --------------------------------------------------------------
    preds = jax.block_until_ready(predict(x, weight, bias))
    ref_preds = jnp.where(jax.nn.sigmoid(ref) > 0.5, 1.0, 0.0)
    assert preds.shape == (batch, 1)
    assert jnp.array_equal(preds, ref_preds)

    print("KERNEL_OK")
</pallas_src>

<mosaic_0001>
module attributes {stable_mosaic.version = 11 : i64} {
  func.func @_loglinear_kernel(%arg0: i32, %arg1: memref<8x32xf32, #tpu.memory_space<vmem>>, %arg2: memref<1x32xf32, #tpu.memory_space<vmem>>, %arg3: memref<1xf32, #tpu.memory_space<smem>>, %arg4: memref<1x8xf32, #tpu.memory_space<vmem>>) attributes {dimension_semantics = [#tpu.dimension_semantics<parallel>], iteration_bounds = array<i64: 1>, scalar_prefetch = 0 : i64, scratch_operands = 0 : i64, tpu.core_type = #tpu.core_type<tc>, window_params = [{transform_indices = @transform_0, window_bounds = array<i64: 8, 32>}, {pipeline_mode = #tpu.pipeline_mode<synchronous>, transform_indices = @transform_1, window_bounds = array<i64: 1, 32>}, {transform_indices = @transform_2, window_bounds = array<i64: 1>}, {transform_indices = @transform_3, window_bounds = array<i64: 1, 8>}]} {
    %c0 = arith.constant 0 : index
    %c0_0 = arith.constant 0 : index
    %0 = vector.load %arg2[%c0, %c0_0] : memref<1x32xf32, #tpu.memory_space<vmem>>, vector<1x32xf32>
    %c0_1 = arith.constant 0 : index
    %c0_2 = arith.constant 0 : index
    %1 = vector.load %arg1[%c0_1, %c0_2] : memref<8x32xf32, #tpu.memory_space<vmem>>, vector<8x32xf32>
    %cst = arith.constant dense<0.000000e+00> : vector<1x8xf32>
    %2 = tpu.matmul %0, %1, %cst {dimension_numbers = #tpu.dot_dimension_numbers<[1], [1], [0], [0], [0, 0, 1, 0], [], []>, precision = #tpu.contract_precision<fp32>} : vector<1x32xf32>, vector<8x32xf32>, vector<1x8xf32> -> vector<1x8xf32>
    %c0_3 = arith.constant 0 : index
    %3 = memref.load %arg3[%c0_3] : memref<1xf32, #tpu.memory_space<smem>>
    %4 = vector.broadcast %3 : f32 to vector<1x8xf32>
    %5 = arith.addf %2, %4 : vector<1x8xf32>
    %c0_4 = arith.constant 0 : index
    %c0_5 = arith.constant 0 : index
    %6 = vector.load %arg4[%c0_4, %c0_5] : memref<1x8xf32, #tpu.memory_space<vmem>>, vector<1x8xf32>
    tpu.vector_store %arg4[%c0_4, %c0_5], %5 {strides = array<i32>} : memref<1x8xf32, #tpu.memory_space<vmem>>, vector<1x8xf32>,
    return
  }
  func.func @transform_0(%arg0: i32) -> (i32, i32) {
    %c0_i32 = arith.constant 0 : i32
    %c0_i32_0 = arith.constant 0 : i32
    return %arg0, %c0_i32 : i32, i32
  }
  func.func @transform_1(%arg0: i32) -> (i32, i32) {
    %c0_i32 = arith.constant 0 : i32
    %c0_i32_0 = arith.constant 0 : i32
    %c0_i32_1 = arith.constant 0 : i32
    return %c0_i32, %c0_i32_0 : i32, i32
  }
  func.func @transform_2(%arg0: i32) -> i32 {
    %c0_i32 = arith.constant 0 : i32
    %c0_i32_0 = arith.constant 0 : i32
    return %c0_i32 : i32
  }
  func.func @transform_3(%arg0: i32) -> (i32, i32) {
    %c0_i32 = arith.constant 0 : i32
    %c0_i32_0 = arith.constant 0 : i32
    return %c0_i32, %arg0 : i32, i32
  }
}

</mosaic_0001>

<llo_original>
// kernel: tpu_custom_call.1
$region0: #{tpu_custom_call.1}
  #allocation0 [shape = 'u32[]', space=smem, size = 0x4, offset = 0x4, fixed_abs, tag = 'smem constant byte address 0x4 - core index']
  #allocation1 [shape = 'u32[72,128]{1,0:T(1,128)}', space=vmem, size = 0x9000, scoped, tag = 'internal scratch']
  #allocation2 [shape = 'f32[1]{0:T(128)S(6)}', space=smem, size = 0x200, scoped, tag = 'scoped memory for tpu_custom_call.1']
  %s0 = inlined_call_operand.hbm [shape: f32[8,32], index: 0, kind: input, shape index: {}]
  %s1 = inlined_call_operand.vmem [shape: f32[1,32], index: 1, kind: input, shape index: {}]
  %s2 = inlined_call_operand.<no memory space> [shape: f32[1], index: 2, kind: input, shape index: {}]
  %s3 = inlined_call_operand.hbm [shape: f32[1,8], index: 3, kind: output, shape index: {}]
  %s4 = sld [smem:[#allocation0]]
  $region26: #{tpu_custom_call.1} parent=0
    _
  %s6 = ssub.s32 1, %s4
  %s7 = scalar_select 0, %s6, %s4
  %8 = sst [smem:[#allocation2]] %s2
  $region1: #{tpu_custom_call.1} parent=0
    #allocation3 [shape = 'u8[4096]{0}', space=vmem, size = 0x1000, scoped, tag = 'input window, operand 0, single buffered']
    #allocation4 [shape = 's32[1]{0}', space=sflag, size = 0x4, scoped, tag = 'scoped memory for tpu_custom_call.1']
    #allocation5 [shape = 's32[1]{0}', space=sflag, size = 0x4, scoped, tag = 'scoped memory for tpu_custom_call.1']
    #allocation6 [shape = 'u8[512]{0}', space=vmem, size = 0x400, scoped, tag = 'output window, operand 0, single buffered']
    %9 = vsyncpa [#allocation4], 0
    %10 = vsyncpa [#allocation5], 0
    // Predicated region
    $region2: #{tpu_custom_call.1} parent=1 // pred_check
      _
    $region3: #{tpu_custom_call.1} parent=1 // pred_check_branch
      %12 = sbr.rel (0) target = $region5
    $region4: #{tpu_custom_call.1} parent=1 // pred_region
      %14 = vsyncadd [#allocation4], 0
      %s16 = sshll.u32 %s0, 4
      %s17 = int_to_ptr.hbm [resolvable:$true] %s16
      %s18 = sshll.u32 [#allocation3], 4
      %s19 = int_to_ptr.vmem [resolvable:$true] %s18
      %21 = dma.hbm_to_vmem [thread:$0]  %s17, 128, %s19, [#allocation4]
    $region5: #{tpu_custom_call.1} parent=1 // pred_fallthru
      _
    // Predicated region
    $region6: #{tpu_custom_call.1} parent=1 // pred_check
      _
    $region7: #{tpu_custom_call.1} parent=1 // pred_check_branch
      %23 = sbr.rel (0) target = $region9
    $region8: #{tpu_custom_call.1} parent=1 // pred_region
      _
    $region9: #{tpu_custom_call.1} parent=1 // pred_fallthru
      _
    // Predicated region
    $region10: #{tpu_custom_call.1} parent=1 // pred_check
      _
    $region11: #{tpu_custom_call.1} parent=1 // pred_check_branch
      %25 = sbr.rel (0) target = $region13
    $region12: #{tpu_custom_call.1} parent=1 // pred_region
      _
    $region13: #{tpu_custom_call.1} parent=1 // pred_fallthru
      _
    // Predicated region
    $region14: #{tpu_custom_call.1} parent=1 // pred_check
      _
    $region15: #{tpu_custom_call.1} parent=1 // pred_check_branch
      %27 = sbr.rel (0) target = $region17
    $region16: #{tpu_custom_call.1} parent=1 // pred_region
      %29 = dma.done [#allocation4], 128
    $region17: #{tpu_custom_call.1} parent=1 // pred_fallthru
      _
    %v30 = vld [vmem:[%s1] sm:$0x1]
    %v31 = vld [vmem:[#allocation3] sm:$0xff]
    %s32 = sld [smem:[#allocation2]]
    %v33 = vstv %s32
    %vm34 = vcmask 261120
    %v36 = vsel %vm34, %v30, 0
    %v39 = vsel %vm34, %v31, 0
    %41 = vmatpush.xpose.msra.mxu0 0.0
    %42 = vmatpush.xpose.msra.mxu0 0.0
    %43 = vmatpush.xpose.msra.mxu0 0.0
    %44 = vmatpush.xpose.msra.mxu0 0.0
    %45 = vmatpush.xpose.msra.mxu0 0.0
    %46 = vmatpush.xpose.msra.mxu0 0.0
    %47 = vmatpush.xpose.msra.mxu0 0.0
    %48 = vmatpush.xpose.msra.mxu0 0.0
    %49 = vmatpush.xpose.msra.mxu0 0.0
    %50 = vmatpush.xpose.msra.mxu0 0.0
    %51 = vmatpush.xpose.msra.mxu0 0.0
    %52 = vmatpush.xpose.msra.mxu0 0.0
    %53 = vmatpush.xpose.msra.mxu0 0.0
    %54 = vmatpush.xpose.msra.mxu0 0.0
    %55 = vmatpush.xpose.msra.mxu0 0.0
    %v56 = vand.u32 %v39, 4294901760
    %57 = vmatpush.xpose.msra.mxu0 %v56
    %v58 = vand.u32 %v36, 4294901760
    %v59 = vsub.f32 %v36, %v58
    %v60 = vand.u32 %v59, 4294901760
    %v61 = vsub.f32 %v59, %v60
    %v62 = vand.u32 %v61, 4294901760
    %63 = vmatmul.f32.gmra.mxu0 %v62
    %v64 = vpop.f32.mrf.mxu0
    %v65 = vadd.f32 %v33, %v64
    %66 = vdwg.mxu0
    %67 = vmatpush.xpose.msra.mxu0 0.0
    %68 = vmatpush.xpose.msra.mxu0 0.0
    %69 = vmatpush.xpose.msra.mxu0 0.0
    %70 = vmatpush.xpose.msra.mxu0 0.0
    %71 = vmatpush.xpose.msra.mxu0 0.0
    %72 = vmatpush.xpose.msra.mxu0 0.0
    %73 = vmatpush.xpose.msra.mxu0 0.0
    %74 = vmatpush.xpose.msra.mxu0 0.0
    %75 = vmatpush.xpose.msra.mxu0 0.0
    %76 = vmatpush.xpose.msra.mxu0 0.0
    %77 = vmatpush.xpose.msra.mxu0 0.0
    %78 = vmatpush.xpose.msra.mxu0 0.0
    %79 = vmatpush.xpose.msra.mxu0 0.0
    %80 = vmatpush.xpose.msra.mxu0 0.0
    %81 = vmatpush.xpose.msra.mxu0 0.0
    %v82 = vand.u32 %v39, 4294901760
    %v83 = vsub.f32 %v39, %v82
    %v84 = vand.u32 %v83, 4294901760
    %v85 = vsub.f32 %v83, %v84
    %v86 = vand.u32 %v85, 4294901760
    %87 = vmatpush.xpose.msra.mxu0 %v86
    %v88 = vand.u32 %v36, 4294901760
    %89 = vmatmul.f32.gmra.mxu0 %v88
    %v90 = vpop.f32.mrf.mxu0
    %v91 = vadd.f32 %v65, %v90
    %92 = vdwg.mxu0
    %93 = vmatpush.xpose.msra.mxu0 0.0
    %94 = vmatpush.xpose.msra.mxu0 0.0
    %95 = vmatpush.xpose.msra.mxu0 0.0
    %96 = vmatpush.xpose.msra.mxu0 0.0
    %97 = vmatpush.xpose.msra.mxu0 0.0
    %98 = vmatpush.xpose.msra.mxu0 0.0
    %99 = vmatpush.xpose.msra.mxu0 0.0
    %100 = vmatpush.xpose.msra.mxu0 0.0
    %101 = vmatpush.xpose.msra.mxu0 0.0
    %102 = vmatpush.xpose.msra.mxu0 0.0
    %103 = vmatpush.xpose.msra.mxu0 0.0
    %104 = vmatpush.xpose.msra.mxu0 0.0
    %105 = vmatpush.xpose.msra.mxu0 0.0
    %106 = vmatpush.xpose.msra.mxu0 0.0
    %107 = vmatpush.xpose.msra.mxu0 0.0
    %v108 = vand.u32 %v39, 4294901760
    %v109 = vsub.f32 %v39, %v108
    %110 = vmatpush.xpose.msra.mxu0 %v109
    %v111 = vand.u32 %v36, 4294901760
    %v112 = vsub.f32 %v36, %v111
    %113 = vmatmul.f32.gmra.mxu0 %v112
    %v114 = vpop.f32.mrf.mxu0
    %v115 = vadd.f32 %v91, %v114
    %116 = vdwg.mxu0
    %117 = vmatpush.xpose.msra.mxu0 0.0
    %118 = vmatpush.xpose.msra.mxu0 0.0
    %119 = vmatpush.xpose.msra.mxu0 0.0
    %120 = vmatpush.xpose.msra.mxu0 0.0
    %121 = vmatpush.xpose.msra.mxu0 0.0
    %122 = vmatpush.xpose.msra.mxu0 0.0
    %123 = vmatpush.xpose.msra.mxu0 0.0
    %124 = vmatpush.xpose.msra.mxu0 0.0
    %125 = vmatpush.xpose.msra.mxu0 0.0
    %126 = vmatpush.xpose.msra.mxu0 0.0
    %127 = vmatpush.xpose.msra.mxu0 0.0
    %128 = vmatpush.xpose.msra.mxu0 0.0
    %129 = vmatpush.xpose.msra.mxu0 0.0
    %130 = vmatpush.xpose.msra.mxu0 0.0
    %131 = vmatpush.xpose.msra.mxu0 0.0
    %v132 = vand.u32 %v39, 4294901760
    %133 = vmatpush.xpose.msra.mxu0 %v132
    %v134 = vand.u32 %v36, 4294901760
    %v135 = vsub.f32 %v36, %v134
    %v136 = vand.u32 %v135, 4294901760
    %137 = vmatmul.f32.gmra.mxu0 %v136
    %v138 = vpop.f32.mrf.mxu0
    %v139 = vadd.f32 %v115, %v138
    %140 = vdwg.mxu0
    %141 = vmatpush.xpose.msra.mxu0 0.0
    %142 = vmatpush.xpose.msra.mxu0 0.0
    %143 = vmatpush.xpose.msra.mxu0 0.0
    %144 = vmatpush.xpose.msra.mxu0 0.0
    %145 = vmatpush.xpose.msra.mxu0 0.0
    %146 = vmatpush.xpose.msra.mxu0 0.0
    %147 = vmatpush.xpose.msra.mxu0 0.0
    %148 = vmatpush.xpose.msra.mxu0 0.0
    %149 = vmatpush.xpose.msra.mxu0 0.0
    %150 = vmatpush.xpose.msra.mxu0 0.0
    %151 = vmatpush.xpose.msra.mxu0 0.0
    %152 = vmatpush.xpose.msra.mxu0 0.0
    %153 = vmatpush.xpose.msra.mxu0 0.0
    %154 = vmatpush.xpose.msra.mxu0 0.0
    %155 = vmatpush.xpose.msra.mxu0 0.0
    %v156 = vand.u32 %v39, 4294901760
    %v157 = vsub.f32 %v39, %v156
    %v158 = vand.u32 %v157, 4294901760
    %159 = vmatpush.xpose.msra.mxu0 %v158
    %v160 = vand.u32 %v36, 4294901760
    %161 = vmatmul.f32.gmra.mxu0 %v160
    %v162 = vpop.f32.mrf.mxu0
    %v163 = vadd.f32 %v139, %v162
    %164 = vdwg.mxu0
    %165 = vmatpush.xpose.msra.mxu0 0.0
    %166 = vmatpush.xpose.msra.mxu0 0.0
    %167 = vmatpush.xpose.msra.mxu0 0.0
    %168 = vmatpush.xpose.msra.mxu0 0.0
    %169 = vmatpush.xpose.msra.mxu0 0.0
    %170 = vmatpush.xpose.msra.mxu0 0.0
    %171 = vmatpush.xpose.msra.mxu0 0.0
    %172 = vmatpush.xpose.msra.mxu0 0.0
    %173 = vmatpush.xpose.msra.mxu0 0.0
    %174 = vmatpush.xpose.msra.mxu0 0.0
    %175 = vmatpush.xpose.msra.mxu0 0.0
    %176 = vmatpush.xpose.msra.mxu0 0.0
    %177 = vmatpush.xpose.msra.mxu0 0.0
    %178 = vmatpush.xpose.msra.mxu0 0.0
    %179 = vmatpush.xpose.msra.mxu0 0.0
    %v180 = vand.u32 %v39, 4294901760
    %181 = vmatpush.xpose.msra.mxu0 %v180
    %v182 = vand.u32 %v36, 4294901760
    %183 = vmatmul.f32.gmra.mxu0 %v182
    %v184 = vpop.f32.mrf.mxu0
    %v185 = vadd.f32 %v163, %v184
    %186 = vdwg.mxu0
    %vm187 = vcmask 57344
    %188 = vst.msk [vmem:[#allocation6] sm:$0x1] %vm187, %v185
    // Predicated region
    $region18: #{tpu_custom_call.1} parent=1 // pred_check
      _
    $region19: #{tpu_custom_call.1} parent=1 // pred_check_branch
      %190 = sbr.rel (0) target = $region21
    $region20: #{tpu_custom_call.1} parent=1 // pred_region
      %192 = vsyncadd [#allocation5], 0
      %s194 = sshll.u32 [#allocation6], 4
      %s195 = int_to_ptr.vmem [resolvable:$true] %s194
      %s196 = sshll.u32 %s3, 4
      %s197 = int_to_ptr.hbm [resolvable:$true] %s196
      %199 = dma.vmem_to_hbm [thread:$0]  %s195, 16, %s197, [#allocation5]
    $region21: #{tpu_custom_call.1} parent=1 // pred_fallthru
      _
    // Predicated region
    $region22: #{tpu_custom_call.1} parent=1 // pred_check
      _
    $region23: #{tpu_custom_call.1} parent=1 // pred_check_branch
      %201 = sbr.rel (0) target = $region25
    $region24: #{tpu_custom_call.1} parent=1 // pred_region
      %203 = dma.done [#allocation5], 16
    $region25: #{tpu_custom_call.1} parent=1 // pred_fallthru
      _
    %204 = vsyncpa [#allocation4], 1
    %205 = vsyncpa [#allocation5], 1

</llo_original>
